<compile_context>
chip_gen: v5e
topology: v5e:2x2
jax: 0.10.0
libtpu: 0.0.40
codegen_flags: <defaults>
</compile_context>

<pallas_src>
import functools
import math

import jax
import jax.numpy as jnp
from jax.experimental import pallas as pl
from jax.experimental.pallas import tpu as pltpu


def _lstm_cell_kernel(xh_ref, c_ref, w_ref, b_ref, *out_refs,
                      precision, emit_gates):
    """One batch tile of the LSTM cell.

    xh_ref : [bB, I+H]  concat(x_t, h_0)                 (activations)
    c_ref  : [bB, H]    c_0
    w_ref  : [I+H, 4H]  stacked [w_ih.T ; w_hh.T]        (grid-resident)
    b_ref  : [1, 4H]    b_ih + b_hh, f32                 (grid-resident)
    out    : h_n [bB,H], c_n [bB,H], (gates [bB,4H] pre-activation)
    """
    H = c_ref.shape[1]

    # Single fused MXU matmul, f32 accumulation. Activation cast is a no-op on
    # the f32 path and a cheap VPU cast on the bf16-weight path.
    xh = xh_ref[...].astype(w_ref.dtype)
    gates = jnp.dot(xh, w_ref[...],
                    preferred_element_type=jnp.float32,
                    precision=precision) + b_ref[...]

    # Nonlinearities: sigmoid on the full lane-dense [bB, 4H] slab (i, f, o
    # chunks all need it), tanh only on the g chunk. State math in f32.
    sig = jax.nn.sigmoid(gates)
    i_s = sig[:, 0 * H:1 * H]
    f_s = sig[:, 1 * H:2 * H]
    o_s = sig[:, 3 * H:4 * H]
    g_t = jnp.tanh(gates[:, 2 * H:3 * H])

    c_1 = c_ref[...] * f_s + i_s * g_t
    h_1 = o_s * jnp.tanh(c_1)

    if emit_gates:
        h1_ref, c1_ref, gates_ref = out_refs
        gates_ref[...] = gates.astype(gates_ref.dtype)   # lane-dense [bB, 4H]
    else:
        h1_ref, c1_ref = out_refs
    h1_ref[...] = h_1.astype(h1_ref.dtype)
    c1_ref[...] = c_1.astype(c1_ref.dtype)


def _pick_block_b(B):
    """Batch tile: multiple of 8 sublanes that divides B, else full batch."""
    if B % 8 !=  0:
        return B
    for cand in (512, 256, 128, 64, 32, 16, 8):
        if cand <= B and B % cand == 0:
            return cand
    return B


def lstm_cell_forward(x_t, h_0, c_0, w_ih, w_hh, b_ih, b_hh, *,
                      weight_dtype=jnp.float32, return_gates=True):
    """Pallas-backed equivalent of _LSTMCell.forward.

    Args:
      x_t:  [B, input_size] float32
      h_0:  [B, hidden_size] float32
      c_0:  [B, hidden_size] float32
      w_ih: [4*hidden, input_size]
      w_hh: [4*hidden, hidden_size]
      b_ih, b_hh: [4*hidden]
      weight_dtype: jnp.float32 (bit-quality) or jnp.bfloat16 (half the weight
        DMA; f32 accumulation and f32 gate/state math are kept).
      return_gates: if False, only h_n / c_n are produced (less HBM writeback).
    Returns dict with keys 'h_n', 'c_n' (+ 'i', 'f', 'g', 'o' if return_gates).
    """
    B, input_size = x_t.shape
    H = h_0.shape[1]
    four_h = 4 * H
    K = input_size + H

    # Glue: fuse the two matmuls and the two bias vectors.
    xh = jnp.concatenate([x_t, h_0], axis=1)                       # [B, I+H]
    w = jnp.concatenate([jnp.transpose(w_ih), jnp.transpose(w_hh)],
                        axis=0).astype(weight_dtype)               # [I+H, 4H]
    b = (b_ih + b_hh).astype(jnp.float32).reshape(1, four_h)       # [1, 4H]

    block_b = _pick_block_b(B)
    nb = B // block_b

    precision = (jax.lax.Precision.HIGHEST if w.dtype == jnp.float32
                 else jax.lax.Precision.DEFAULT)
    kernel = functools.partial(_lstm_cell_kernel,
                               precision=precision,
                               emit_gates=return_gates)

    in_specs = [
        pl.BlockSpec((block_b, K), lambda i: (i, 0)),       # xh   (pipelined)
        pl.BlockSpec((block_b, H), lambda i: (i, 0)),       # c_0  (pipelined)
        pl.BlockSpec((K, four_h), lambda i: (0, 0)),        # weights (resident)
        pl.BlockSpec((1, four_h), lambda i: (0, 0)),        # bias    (resident)
    ]
    out_shapes = [
        jax.ShapeDtypeStruct((B, H), x_t.dtype),            # h_n
        jax.ShapeDtypeStruct((B, H), x_t.dtype),            # c_n
    ]
    out_specs = [
        pl.BlockSpec((block_b, H), lambda i: (i, 0)),
        pl.BlockSpec((block_b, H), lambda i: (i, 0)),
    ]
    if return_gates:
        out_shapes.append(jax.ShapeDtypeStruct((B, four_h), x_t.dtype))
        out_specs.append(pl.BlockSpec((block_b, four_h), lambda i: (i, 0)))

    outs = pl.pallas_call(
        kernel,
        out_shape=tuple(out_shapes),
        grid_spec=pltpu.PrefetchScalarGridSpec(
            num_scalar_prefetch=0,
            grid=(nb,),
            in_specs=in_specs,
            out_specs=tuple(out_specs),
        ),
        compiler_params=pltpu.CompilerParams(
            dimension_semantics=("parallel",),
        ),
    )(xh, c_0, w, b)

    if return_gates:
        h_n, c_n, gates = outs
        return {
            "h_n": h_n, "c_n": c_n,
            "i": gates[:, 0 * H:1 * H],
            "f": gates[:, 1 * H:2 * H],
            "g": gates[:, 2 * H:3 * H],
            "o": gates[:, 3 * H:4 * H],
        }
    h_n, c_n = outs
    return {"h_n": h_n, "c_n": c_n}


def init_lstm_cell_params(key, input_size, hidden_size, initial_forget_bias=0.0):
    """Deterministic parameter init matching _LSTMCell._reset_parameters."""
    stdv = math.sqrt(3.0 / hidden_size)
    k1, k2 = jax.random.split(key)
    w_hh = jax.random.uniform(k1, (4 * hidden_size, hidden_size),
                              minval=-stdv, maxval=stdv, dtype=jnp.float32)
    w_ih = jax.random.uniform(k2, (4 * hidden_size, input_size),
                              minval=-stdv, maxval=stdv, dtype=jnp.float32)
    b_hh = jnp.zeros((4 * hidden_size,), jnp.float32)
    b_ih = jnp.zeros((4 * hidden_size,), jnp.float32)
    if initial_forget_bias != 0:
        b_hh = b_hh.at[hidden_size:2 * hidden_size].set(initial_forget_bias)
    return w_ih, w_hh, b_ih, b_hh


def _reference_forward(x_t, h_0, c_0, w_ih, w_hh, b_ih, b_hh):
    hi = jax.lax.Precision.HIGHEST
    gates = (jnp.dot(h_0, w_hh.T, precision=hi) + b_hh
             + jnp.dot(x_t, w_ih.T, precision=hi) + b_ih)
    H = h_0.shape[1]
    i, f, g, o = (gates[:, 0:H], gates[:, H:2 * H],
                  gates[:, 2 * H:3 * H], gates[:, 3 * H:4 * H])
    c_1 = c_0 * jax.nn.sigmoid(f) + jax.nn.sigmoid(i) * jnp.tanh(g)
    h_1 = jax.nn.sigmoid(o) * jnp.tanh(c_1)
    return {"h_n": h_1, "c_n": c_1, "i": i, "f": f, "g": g, "o": o}


if __name__ == "__main__":
    import numpy as np

    B, input_size, hidden_size = 8, 16, 32
    key = jax.random.PRNGKey(0)
    kp, kx, kh, kc = jax.random.split(key, 4)

    w_ih, w_hh, b_ih, b_hh = init_lstm_cell_params(
        kp, input_size, hidden_size, initial_forget_bias=3.0)

    x_t = jax.random.normal(kx, (B, input_size), dtype=jnp.float32)
    h_0 = jax.random.normal(kh, (B, hidden_size), dtype=jnp.float32)
    c_0 = jax.random.normal(kc, (B, hidden_size), dtype=jnp.float32)

    ref = _reference_forward(x_t, h_0, c_0, w_ih, w_hh, b_ih, b_hh)

    # f32-weight path (bit-quality): tight tolerance vs. reference.
    out = lstm_cell_forward(x_t, h_0, c_0, w_ih, w_hh, b_ih, b_hh,
                            weight_dtype=jnp.float32, return_gates=True)
    jax.block_until_ready(out)
    for k in ("h_n", "c_n", "i", "f", "g", "o"):
        np.testing.assert_allclose(np.asarray(out[k]), np.asarray(ref[k]),
                                   rtol=1e-5, atol=1e-5)

    # bf16-weight path (half the weight DMA): loose tolerance vs. f32 reference.
    out_bf16 = lstm_cell_forward(x_t, h_0, c_0, w_ih, w_hh, b_ih, b_hh,
                                 weight_dtype=jnp.bfloat16, return_gates=True)
    jax.block_until_ready(out_bf16)
    for k in ("h_n", "c_n", "i", "f", "g", "o"):
        np.testing.assert_allclose(np.asarray(out_bf16[k]), np.asarray(ref[k]),
                                   rtol=5e-2, atol=5e-2)

    # Inference path: only h_n / c_n outputs.
    out_inf = lstm_cell_forward(x_t, h_0, c_0, w_ih, w_hh, b_ih, b_hh,
                                return_gates=False)
    jax.block_until_ready(out_inf)
    np.testing.assert_allclose(np.asarray(out_inf["h_n"]),
                               np.asarray(ref["h_n"]), rtol=1e-5, atol=1e-5)
    np.testing.assert_allclose(np.asarray(out_inf["c_n"]),
                               np.asarray(ref["c_n"]), rtol=1e-5, atol=1e-5)

    print("KERNEL_OK")
</pallas_src>

<mosaic_0001>
module attributes {stable_mosaic.version = 11 : i64} {
  func.func @_lstm_cell_kernel(%arg0: i32, %arg1: memref<8x48xf32, #tpu.memory_space<vmem>>, %arg2: memref<8x32xf32, #tpu.memory_space<vmem>>, %arg3: memref<48x128xf32, #tpu.memory_space<vmem>>, %arg4: memref<1x128xf32, #tpu.memory_space<vmem>>, %arg5: memref<8x32xf32, #tpu.memory_space<vmem>>, %arg6: memref<8x32xf32, #tpu.memory_space<vmem>>, %arg7: memref<8x128xf32, #tpu.memory_space<vmem>>) attributes {dimension_semantics = [#tpu.dimension_semantics<parallel>], iteration_bounds = array<i64: 1>, scalar_prefetch = 0 : i64, scratch_operands = 0 : i64, tpu.core_type = #tpu.core_type<tc>, window_params = [{transform_indices = @transform_0, window_bounds = array<i64: 8, 48>}, {transform_indices = @transform_1, window_bounds = array<i64: 8, 32>}, {pipeline_mode = #tpu.pipeline_mode<synchronous>, transform_indices = @transform_2, window_bounds = array<i64: 48, 128>}, {pipeline_mode = #tpu.pipeline_mode<synchronous>, transform_indices = @transform_3, window_bounds = array<i64: 1, 128>}, {transform_indices = @transform_4, window_bounds = array<i64: 8, 32>}, {transform_indices = @transform_5, window_bounds = array<i64: 8, 32>}, {transform_indices = @transform_6, window_bounds = array<i64: 8, 128>}]} {
    %c0 = arith.constant 0 : index
    %c0_0 = arith.constant 0 : index
    %0 = vector.load %arg1[%c0, %c0_0] : memref<8x48xf32, #tpu.memory_space<vmem>>, vector<8x48xf32>
    %c0_1 = arith.constant 0 : index
    %c0_2 = arith.constant 0 : index
    %1 = vector.load %arg3[%c0_1, %c0_2] : memref<48x128xf32, #tpu.memory_space<vmem>>, vector<48x128xf32>
    %cst = arith.constant dense<0.000000e+00> : vector<8x128xf32>
    %2 = tpu.matmul %0, %1, %cst {dimension_numbers = #tpu.dot_dimension_numbers<[1], [0], [0], [1], [0, 0, 1, 1], [], []>, precision = #tpu.contract_precision<fp32>} : vector<8x48xf32>, vector<48x128xf32>, vector<8x128xf32> -> vector<8x128xf32>
    %c0_3 = arith.constant 0 : index
    %c0_4 = arith.constant 0 : index
    %3 = vector.load %arg4[%c0_3, %c0_4] : memref<1x128xf32, #tpu.memory_space<vmem>>, vector<1x128xf32>
    %4 = vector.broadcast %3 : vector<1x128xf32> to vector<8x128xf32>
    %5 = arith.addf %2, %4 : vector<8x128xf32>
    %6 = arith.negf %5 : vector<8x128xf32>
    %7 = math.exp %6 : vector<8x128xf32>
    %cst_5 = arith.constant 1.000000e+00 : f32
    %8 = vector.broadcast %cst_5 : f32 to vector<8x128xf32>
    %9 = arith.addf %8, %7 : vector<8x128xf32>
    %10 = arith.divf %8, %9 : vector<8x128xf32>
    %11 = vector.extract_strided_slice %10 {offsets = [0, 0], sizes = [8, 32], strides = [1, 1]} : vector<8x128xf32> to vector<8x32xf32>
    %12 = vector.extract_strided_slice %10 {offsets = [0, 32], sizes = [8, 32], strides = [1, 1]} : vector<8x128xf32> to vector<8x32xf32>
    %13 = vector.extract_strided_slice %10 {offsets = [0, 96], sizes = [8, 32], strides = [1, 1]} : vector<8x128xf32> to vector<8x32xf32>
    %14 = vector.extract_strided_slice %5 {offsets = [0, 64], sizes = [8, 32], strides = [1, 1]} : vector<8x128xf32> to vector<8x32xf32>
    %15 = math.tanh %14 : vector<8x32xf32>
    %c0_6 = arith.constant 0 : index
    %c0_7 = arith.constant 0 : index
    %16 = vector.load %arg2[%c0_6, %c0_7] : memref<8x32xf32, #tpu.memory_space<vmem>>, vector<8x32xf32>
    %17 = arith.mulf %16, %12 : vector<8x32xf32>
    %18 = arith.mulf %11, %15 : vector<8x32xf32>
    %19 = arith.addf %17, %18 : vector<8x32xf32>
    %20 = math.tanh %19 : vector<8x32xf32>
    %21 = arith.mulf %13, %20 : vector<8x32xf32>
    %c0_8 = arith.constant 0 : index
    %c0_9 = arith.constant 0 : index
    %22 = vector.load %arg7[%c0_8, %c0_9] : memref<8x128xf32, #tpu.memory_space<vmem>>, vector<8x128xf32>
    tpu.vector_store %arg7[%c0_8, %c0_9], %5 {strides = array<i32>} : memref<8x128xf32, #tpu.memory_space<vmem>>, vector<8x128xf32>,
    %c0_10 = arith.constant 0 : index
    %c0_11 = arith.constant 0 : index
    %23 = vector.load %arg5[%c0_10, %c0_11] : memref<8x32xf32, #tpu.memory_space<vmem>>, vector<8x32xf32>
    tpu.vector_store %arg5[%c0_10, %c0_11], %21 {strides = array<i32>} : memref<8x32xf32, #tpu.memory_space<vmem>>, vector<8x32xf32>,
    %c0_12 = arith.constant 0 : index
    %c0_13 = arith.constant 0 : index
    %24 = vector.load %arg6[%c0_12, %c0_13] : memref<8x32xf32, #tpu.memory_space<vmem>>, vector<8x32xf32>
    tpu.vector_store %arg6[%c0_12, %c0_13], %19 {strides = array<i32>} : memref<8x32xf32, #tpu.memory_space<vmem>>, vector<8x32xf32>,
    return
  }
  func.func @transform_0(%arg0: i32) -> (i32, i32) {
    %c0_i32 = arith.constant 0 : i32
    %c0_i32_0 = arith.constant 0 : i32
    return %arg0, %c0_i32 : i32, i32
  }
  func.func @transform_1(%arg0: i32) -> (i32, i32) {
    %c0_i32 = arith.constant 0 : i32
    %c0_i32_0 = arith.constant 0 : i32
    return %arg0, %c0_i32 : i32, i32
  }
  func.func @transform_2(%arg0: i32) -> (i32, i32) {
    %c0_i32 = arith.constant 0 : i32
    %c0_i32_0 = arith.constant 0 : i32
    %c0_i32_1 = arith.constant 0 : i32
    return %c0_i32, %c0_i32_0 : i32, i32
  }
  func.func @transform_3(%arg0: i32) -> (i32, i32) {
    %c0_i32 = arith.constant 0 : i32
    %c0_i32_0 = arith.constant 0 : i32
    %c0_i32_1 = arith.constant 0 : i32
    return %c0_i32, %c0_i32_0 : i32, i32
  }
  func.func @transform_4(%arg0: i32) -> (i32, i32) {
    %c0_i32 = arith.constant 0 : i32
    %c0_i32_0 = arith.constant 0 : i32
    return %arg0, %c0_i32 : i32, i32
  }
  func.func @transform_5(%arg0: i32) -> (i32, i32) {
    %c0_i32 = arith.constant 0 : i32
    %c0_i32_0 = arith.constant 0 : i32
    return %arg0, %c0_i32 : i32, i32
  }
  func.func @transform_6(%arg0: i32) -> (i32, i32) {
    %c0_i32 = arith.constant 0 : i32
    %c0_i32_0 = arith.constant 0 : i32
    return %arg0, %c0_i32 : i32, i32
  }
}

</mosaic_0001>

<llo_original>
// kernel: tpu_custom_call.1
$region0: #{tpu_custom_call.1}
  #allocation0 [shape = 'u32[]', space=smem, size = 0x4, offset = 0x4, fixed_abs, tag = 'smem constant byte address 0x4 - core index']
  #allocation1 [shape = 'u32[72,128]{1,0:T(1,128)}', space=vmem, size = 0x9000, scoped, tag = 'internal scratch']
  %s0 = inlined_call_operand.hbm [shape: f32[8,48], index: 0, kind: input, shape index: {}]
  %s1 = inlined_call_operand.hbm [shape: f32[8,32], index: 1, kind: input, shape index: {}]
  %s2 = inlined_call_operand.hbm [shape: f32[48,128], index: 2, kind: input, shape index: {}]
  %s3 = inlined_call_operand.vmem [shape: f32[1,128], index: 3, kind: input, shape index: {}]
  %s4 = inlined_call_operand.hbm [shape: f32[8,32], index: 4, kind: output, shape index: {0}]
  %s5 = inlined_call_operand.hbm [shape: f32[8,32], index: 5, kind: output, shape index: {1}]
  %s6 = inlined_call_operand.hbm [shape: f32[8,128], index: 6, kind: output, shape index: {2}]
  %7 = xla_tuple %s4, %s5, %s6
  %s8 = sld [smem:[#allocation0]]
  $region54: #{tpu_custom_call.1} parent=0
    _
  %s10 = ssub.s32 1, %s8
  %s11 = scalar_select 0, %s10, %s8
  $region1: #{tpu_custom_call.1} parent=0
    #allocation2 [shape = 'u8[4096]{0}', space=vmem, size = 0x1000, scoped, tag = 'input window, operand 0, single buffered']
    #allocation3 [shape = 's32[1]{0}', space=sflag, size = 0x4, scoped, tag = 'scoped memory for tpu_custom_call.1']
    #allocation4 [shape = 's32[1]{0}', space=sflag, size = 0x4, scoped, tag = 'scoped memory for tpu_custom_call.1']
    #allocation5 [shape = 'u8[4096]{0}', space=vmem, size = 0x1000, scoped, tag = 'input window, operand 1, single buffered']
    #allocation6 [shape = 's32[1]{0}', space=sflag, size = 0x4, scoped, tag = 'scoped memory for tpu_custom_call.1']
    #allocation7 [shape = 'u8[24576]{0}', space=vmem, size = 0x6000, scoped, tag = 'input window, operand 2, single buffered']
    #allocation8 [shape = 'u8[4096]{0}', space=vmem, size = 0x1000, scoped, tag = 'output window, operand 0, single buffered']
    #allocation9 [shape = 'u8[4096]{0}', space=vmem, size = 0x1000, scoped, tag = 'output window, operand 1, single buffered']
    #allocation10 [shape = 's32[1]{0}', space=sflag, size = 0x4, scoped, tag = 'scoped memory for tpu_custom_call.1']
    #allocation11 [shape = 'u8[4096]{0}', space=vmem, size = 0x1000, scoped, tag = 'output window, operand 2, single buffered']
    %12 = vsyncpa [#allocation3], 0
    %13 = vsyncpa [#allocation6], 0
    %14 = vsyncpa [#allocation4], 0
    %15 = vsyncpa [#allocation10], 0
    // Predicated region
    $region2: #{tpu_custom_call.1} parent=1 // pred_check
      _
    $region3: #{tpu_custom_call.1} parent=1 // pred_check_branch
      %17 = sbr.rel (0) target = $region5
    $region4: #{tpu_custom_call.1} parent=1 // pred_region
      %19 = vsyncadd [#allocation3], 0
      %s21 = sshll.u32 %s0, 4
      %s22 = int_to_ptr.hbm [resolvable:$true] %s21
      %s23 = sshll.u32 [#allocation2], 4
      %s24 = int_to_ptr.vmem [resolvable:$true] %s23
      %26 = dma.hbm_to_vmem [thread:$0]  %s22, 128, %s24, [#allocation3]
    $region5: #{tpu_custom_call.1} parent=1 // pred_fallthru
      _
    // Predicated region
    $region6: #{tpu_custom_call.1} parent=1 // pred_check
      _
    $region7: #{tpu_custom_call.1} parent=1 // pred_check_branch
      %28 = sbr.rel (0) target = $region9
    $region8: #{tpu_custom_call.1} parent=1 // pred_region
      %30 = vsyncadd [#allocation6], 0
      %s32 = sshll.u32 %s1, 4
      %s33 = int_to_ptr.hbm [resolvable:$true] %s32
      %s34 = sshll.u32 [#allocation5], 4
      %s35 = int_to_ptr.vmem [resolvable:$true] %s34
      %37 = dma.hbm_to_vmem [thread:$0]  %s33, 128, %s35, [#allocation6]
    $region9: #{tpu_custom_call.1} parent=1 // pred_fallthru
      _
    // Predicated region
    $region10: #{tpu_custom_call.1} parent=1 // pred_check
      _
    $region11: #{tpu_custom_call.1} parent=1 // pred_check_branch
      %39 = sbr.rel (0) target = $region13
    $region12: #{tpu_custom_call.1} parent=1 // pred_region
      %41 = vsyncadd [#allocation6], 0
      %s42 = sshll.u32 %s2, 4
      %s43 = int_to_ptr.hbm [resolvable:$true] %s42
      %s44 = sshll.u32 [#allocation7], 4
      %s45 = int_to_ptr.vmem [resolvable:$true] %s44
      %50 = dma.hbm_to_vmem [thread:$0]  %s43, 768, %s45, [#allocation6], 128, 128, 8
    $region13: #{tpu_custom_call.1} parent=1 // pred_fallthru
      _
    // Predicated region
    $region14: #{tpu_custom_call.1} parent=1 // pred_check
      _
    $region15: #{tpu_custom_call.1} parent=1 // pred_check_branch
      %52 = sbr.rel (0) target = $region17
    $region16: #{tpu_custom_call.1} parent=1 // pred_region
      _
    $region17: #{tpu_custom_call.1} parent=1 // pred_fallthru
      _
    // Predicated region
    $region18: #{tpu_custom_call.1} parent=1 // pred_check
      _
    $region19: #{tpu_custom_call.1} parent=1 // pred_check_branch
      %54 = sbr.rel (0) target = $region21
    $region20: #{tpu_custom_call.1} parent=1 // pred_region
      %56 = dma.done [#allocation3], 128
    $region21: #{tpu_custom_call.1} parent=1 // pred_fallthru
      _
    // Predicated region
    $region22: #{tpu_custom_call.1} parent=1 // pred_check
      _
    $region23: #{tpu_custom_call.1} parent=1 // pred_check_branch
      %58 = sbr.rel (0) target = $region25
    $region24: #{tpu_custom_call.1} parent=1 // pred_region
      %60 = dma.done [#allocation6], 128
    $region25: #{tpu_custom_call.1} parent=1 // pred_fallthru
      _
    // Predicated region
    $region26: #{tpu_custom_call.1} parent=1 // pred_check
      _
    $region27: #{tpu_custom_call.1} parent=1 // pred_check_branch
      %62 = sbr.rel (0) target = $region29
    $region28: #{tpu_custom_call.1} parent=1 // pred_region
      %64 = dma.done [#allocation6], 768
    $region29: #{tpu_custom_call.1} parent=1 // pred_fallthru
      _
    %v65 = vld [vmem:[#allocation2] sm:$0xff]
    %v66 = vld [vmem:[#allocation7] sm:$0xff]
    %v67 = vld [vmem:[#allocation7 + $0x8] sm:$0xff]
    %v68 = vld [vmem:[#allocation7 + $0x10] sm:$0xff]
    %v69 = vld [vmem:[#allocation7 + $0x18] sm:$0xff]
    %v70 = vld [vmem:[#allocation7 + $0x20] sm:$0xff]
    %v71 = vld [vmem:[#allocation7 + $0x28] sm:$0xff]
    %v72 = vld [vmem:[%s3] sm:$0x1]
    %v74 = vperm.slane %v72, 0
    %vm76 = vcmask 392192
    %v78 = vsel %vm76, %v65, 0
    %80 = vmatpush.msra.mxu0 0.0
    %81 = vmatpush.msra.mxu0 0.0
    %82 = vmatpush.msra.mxu0 0.0
    %83 = vmatpush.msra.mxu0 0.0
    %84 = vmatpush.msra.mxu0 0.0
    %85 = vmatpush.msra.mxu0 0.0
    %86 = vmatpush.msra.mxu0 0.0
    %87 = vmatpush.msra.mxu0 0.0
    %88 = vmatpush.msra.mxu0 0.0
    %89 = vmatpush.msra.mxu0 0.0
    %v90 = vand.u32 %v71, 4294901760
    %91 = vmatpush.msra.mxu0 %v90
    %v92 = vand.u32 %v70, 4294901760
    %93 = vmatpush.msra.mxu0 %v92
    %v94 = vand.u32 %v69, 4294901760
    %95 = vmatpush.msra.mxu0 %v94
    %v96 = vand.u32 %v68, 4294901760
    %97 = vmatpush.msra.mxu0 %v96
    %v98 = vand.u32 %v67, 4294901760
    %99 = vmatpush.msra.mxu0 %v98
    %v100 = vand.u32 %v66, 4294901760
    %101 = vmatpush.msra.mxu0 %v100
    %v102 = vand.u32 %v78, 4294901760
    %v103 = vsub.f32 %v78, %v102
    %v104 = vand.u32 %v103, 4294901760
    %v105 = vsub.f32 %v103, %v104
    %v106 = vand.u32 %v105, 4294901760
    %107 = vmatmul.f32.gmra.mxu0 %v106
    %v108 = vpop.f32.mrf.mxu0
    %v109 = vadd.f32 %v74, %v108
    %110 = vdwg.mxu0
    %111 = vmatpush.msra.mxu0 0.0
    %112 = vmatpush.msra.mxu0 0.0
    %113 = vmatpush.msra.mxu0 0.0
    %114 = vmatpush.msra.mxu0 0.0
    %115 = vmatpush.msra.mxu0 0.0
    %116 = vmatpush.msra.mxu0 0.0
    %117 = vmatpush.msra.mxu0 0.0
    %118 = vmatpush.msra.mxu0 0.0
    %119 = vmatpush.msra.mxu0 0.0
    %120 = vmatpush.msra.mxu0 0.0
    %v121 = vand.u32 %v71, 4294901760
    %v122 = vsub.f32 %v71, %v121
    %v123 = vand.u32 %v122, 4294901760
    %v124 = vsub.f32 %v122, %v123
    %v125 = vand.u32 %v124, 4294901760
    %126 = vmatpush.msra.mxu0 %v125
    %v127 = vand.u32 %v70, 4294901760
    %v128 = vsub.f32 %v70, %v127
    %v129 = vand.u32 %v128, 4294901760
    %v130 = vsub.f32 %v128, %v129
    %v131 = vand.u32 %v130, 4294901760
    %132 = vmatpush.msra.mxu0 %v131
    %v133 = vand.u32 %v69, 4294901760
    %v134 = vsub.f32 %v69, %v133
    %v135 = vand.u32 %v134, 4294901760
    %v136 = vsub.f32 %v134, %v135
    %v137 = vand.u32 %v136, 4294901760
    %138 = vmatpush.msra.mxu0 %v137
    %v139 = vand.u32 %v68, 4294901760
    %v140 = vsub.f32 %v68, %v139
    %v141 = vand.u32 %v140, 4294901760
    %v142 = vsub.f32 %v140, %v141
    %v143 = vand.u32 %v142, 4294901760
    %144 = vmatpush.msra.mxu0 %v143
    %v145 = vand.u32 %v67, 4294901760
    %v146 = vsub.f32 %v67, %v145
    %v147 = vand.u32 %v146, 4294901760
    %v148 = vsub.f32 %v146, %v147
    %v149 = vand.u32 %v148, 4294901760
    %150 = vmatpush.msra.mxu0 %v149
    %v151 = vand.u32 %v66, 4294901760
    %v152 = vsub.f32 %v66, %v151
    %v153 = vand.u32 %v152, 4294901760
    %v154 = vsub.f32 %v152, %v153
    %v155 = vand.u32 %v154, 4294901760
    %156 = vmatpush.msra.mxu0 %v155
    %v157 = vand.u32 %v78, 4294901760
    %158 = vmatmul.f32.gmra.mxu0 %v157
    %v159 = vpop.f32.mrf.mxu0
    %v160 = vadd.f32 %v109, %v159
    %161 = vdwg.mxu0
    %162 = vmatpush.msra.mxu0 0.0
    %163 = vmatpush.msra.mxu0 0.0
    %164 = vmatpush.msra.mxu0 0.0
    %165 = vmatpush.msra.mxu0 0.0
    %166 = vmatpush.msra.mxu0 0.0
    %167 = vmatpush.msra.mxu0 0.0
    %168 = vmatpush.msra.mxu0 0.0
    %169 = vmatpush.msra.mxu0 0.0
    %170 = vmatpush.msra.mxu0 0.0
    %171 = vmatpush.msra.mxu0 0.0
    %v172 = vand.u32 %v71, 4294901760
    %v173 = vsub.f32 %v71, %v172
    %174 = vmatpush.msra.mxu0 %v173
    %v175 = vand.u32 %v70, 4294901760
    %v176 = vsub.f32 %v70, %v175
    %177 = vmatpush.msra.mxu0 %v176
    %v178 = vand.u32 %v69, 4294901760
    %v179 = vsub.f32 %v69, %v178
    %180 = vmatpush.msra.mxu0 %v179
    %v181 = vand.u32 %v68, 4294901760
    %v182 = vsub.f32 %v68, %v181
    %183 = vmatpush.msra.mxu0 %v182
    %v184 = vand.u32 %v67, 4294901760
    %v185 = vsub.f32 %v67, %v184
    %186 = vmatpush.msra.mxu0 %v185
    %v187 = vand.u32 %v66, 4294901760
    %v188 = vsub.f32 %v66, %v187
    %189 = vmatpush.msra.mxu0 %v188
    %v190 = vand.u32 %v78, 4294901760
    %v191 = vsub.f32 %v78, %v190
    %192 = vmatmul.f32.gmra.mxu0 %v191
    %v193 = vpop.f32.mrf.mxu0
    %v194 = vadd.f32 %v160, %v193
    %195 = vdwg.mxu0
    %196 = vmatpush.msra.mxu0 0.0
    %197 = vmatpush.msra.mxu0 0.0
    %198 = vmatpush.msra.mxu0 0.0
    %199 = vmatpush.msra.mxu0 0.0
    %200 = vmatpush.msra.mxu0 0.0
    %201 = vmatpush.msra.mxu0 0.0
    %202 = vmatpush.msra.mxu0 0.0
    %203 = vmatpush.msra.mxu0 0.0
    %204 = vmatpush.msra.mxu0 0.0
    %205 = vmatpush.msra.mxu0 0.0
    %v206 = vand.u32 %v71, 4294901760
    %207 = vmatpush.msra.mxu0 %v206
    %v208 = vand.u32 %v70, 4294901760
    %209 = vmatpush.msra.mxu0 %v208
    %v210 = vand.u32 %v69, 4294901760
    %211 = vmatpush.msra.mxu0 %v210
    %v212 = vand.u32 %v68, 4294901760
    %213 = vmatpush.msra.mxu0 %v212
    %v214 = vand.u32 %v67, 4294901760
    %215 = vmatpush.msra.mxu0 %v214
    %v216 = vand.u32 %v66, 4294901760
    %217 = vmatpush.msra.mxu0 %v216
    %v218 = vand.u32 %v78, 4294901760
    %v219 = vsub.f32 %v78, %v218
    %v220 = vand.u32 %v219, 4294901760
    %221 = vmatmul.f32.gmra.mxu0 %v220
    %v222 = vpop.f32.mrf.mxu0
    %v223 = vadd.f32 %v194, %v222
    %224 = vdwg.mxu0
    %225 = vmatpush.msra.mxu0 0.0
    %226 = vmatpush.msra.mxu0 0.0
    %227 = vmatpush.msra.mxu0 0.0
    %228 = vmatpush.msra.mxu0 0.0
    %229 = vmatpush.msra.mxu0 0.0
    %230 = vmatpush.msra.mxu0 0.0
    %231 = vmatpush.msra.mxu0 0.0
    %232 = vmatpush.msra.mxu0 0.0
    %233 = vmatpush.msra.mxu0 0.0
    %234 = vmatpush.msra.mxu0 0.0
    %v235 = vand.u32 %v71, 4294901760
    %v236 = vsub.f32 %v71, %v235
    %v237 = vand.u32 %v236, 4294901760
    %238 = vmatpush.msra.mxu0 %v237
    %v239 = vand.u32 %v70, 4294901760
    %v240 = vsub.f32 %v70, %v239
    %v241 = vand.u32 %v240, 4294901760
    %242 = vmatpush.msra.mxu0 %v241
    %v243 = vand.u32 %v69, 4294901760
    %v244 = vsub.f32 %v69, %v243
    %v245 = vand.u32 %v244, 4294901760
    %246 = vmatpush.msra.mxu0 %v245
    %v247 = vand.u32 %v68, 4294901760
    %v248 = vsub.f32 %v68, %v247
    %v249 = vand.u32 %v248, 4294901760
    %250 = vmatpush.msra.mxu0 %v249
    %v251 = vand.u32 %v67, 4294901760
    %v252 = vsub.f32 %v67, %v251
    %v253 = vand.u32 %v252, 4294901760
    %254 = vmatpush.msra.mxu0 %v253
    %v255 = vand.u32 %v66, 4294901760
    %v256 = vsub.f32 %v66, %v255
    %v257 = vand.u32 %v256, 4294901760
    %258 = vmatpush.msra.mxu0 %v257
    %v259 = vand.u32 %v78, 4294901760
    %260 = vmatmul.f32.gmra.mxu0 %v259
    %v261 = vpop.f32.mrf.mxu0
    %v262 = vadd.f32 %v223, %v261
    %263 = vdwg.mxu0
    %264 = vmatpush.msra.mxu0 0.0
    %265 = vmatpush.msra.mxu0 0.0
    %266 = vmatpush.msra.mxu0 0.0
    %267 = vmatpush.msra.mxu0 0.0
    %268 = vmatpush.msra.mxu0 0.0
    %269 = vmatpush.msra.mxu0 0.0
    %270 = vmatpush.msra.mxu0 0.0
    %271 = vmatpush.msra.mxu0 0.0
    %272 = vmatpush.msra.mxu0 0.0
    %273 = vmatpush.msra.mxu0 0.0
    %v274 = vand.u32 %v71, 4294901760
    %275 = vmatpush.msra.mxu0 %v274
    %v276 = vand.u32 %v70, 4294901760
    %277 = vmatpush.msra.mxu0 %v276
    %v278 = vand.u32 %v69, 4294901760
    %279 = vmatpush.msra.mxu0 %v278
    %v280 = vand.u32 %v68, 4294901760
    %281 = vmatpush.msra.mxu0 %v280
    %v282 = vand.u32 %v67, 4294901760
    %283 = vmatpush.msra.mxu0 %v282
    %v284 = vand.u32 %v66, 4294901760
    %285 = vmatpush.msra.mxu0 %v284
    %v286 = vand.u32 %v78, 4294901760
    %287 = vmatmul.f32.gmra.mxu0 %v286
    %v288 = vpop.f32.mrf.mxu0
    %v289 = vadd.f32 %v262, %v288
    %290 = vdwg.mxu0
    %v291 = vxor.u32 %v289, 2147483648
    %v292 = vmul.f32 %v291, 1.442695
    %v293 = vpow.pop %v292
    %v294 = vadd.f32 %v293, 1.0
    %v295 = vrcp.pop %v294
    %v296 = vmul.f32 %v294, %v295
    %v297 = vsub.f32 1.0, %v296
    %v298 = vmul.f32 %v295, %v297
    %v299 = vadd.f32 %v295, %v298
    %vm300 = vweird.f32 %v294
    %vm301 = vweird.f32 %v295
    %vm302 = vmor %vm300, %vm301
    %v303 = vsel %vm302, %v295, %v299
    %v304 = vand.u32 2147483647, %v294
    %vm305 = vcmp.eq.f32.partialorder %v304, 8.507059e+37
    %v306 = vand.u32 %v294, 2147483648
    %v307 = vor.u32 1.1754944e-38, %v306
    %v308 = vsel %vm305, %v307, %v303
    %v309 = vmul.f32 1.0, %v308
    %v310 = vtanh.pop %v289
    %v311 = vld [vmem:[#allocation5] sm:$0xff]
    %313 = vrot.lane.b32.xlu0 %v309, 96
    %v314 = vpop.permute.xlu0 %313
    %v316 = vmul.f32 %v311, %v314
    %318 = vrot.lane.b32.xlu0 %v310, 64
    %v319 = vpop.permute.xlu0 %318
    %v321 = vmul.f32 %v309, %v319
    %v322 = vadd.f32 %v316, %v321
    %v323 = vtanh.pop %v322
    %325 = vrot.lane.b32.xlu0 %v323, 96
    %v326 = vpop.permute.xlu0 %325
    %v328 = vmul.f32 %v309, %v326
    %329 = vst [vmem:[#allocation11] sm:$0xff] %v289
    %331 = vrot.lane.b32.xlu0 %v328, 32
    %v332 = vpop.permute.xlu0 %331
    %vm334 = vcmask 261120
    %335 = vst.msk [vmem:[#allocation8] sm:$0xff] %vm334, %v332
    %336 = vst.msk [vmem:[#allocation9] sm:$0xff] %vm334, %v322
    // Predicated region
    $region30: #{tpu_custom_call.1} parent=1 // pred_check
      _
    $region31: #{tpu_custom_call.1} parent=1 // pred_check_branch
      %338 = sbr.rel (0) target = $region33
    $region32: #{tpu_custom_call.1} parent=1 // pred_region
      %340 = vsyncadd [#allocation4], 0
      %s342 = sshll.u32 [#allocation8], 4
      %s343 = int_to_ptr.vmem [resolvable:$true] %s342
      %s344 = sshll.u32 %s4, 4
      %s345 = int_to_ptr.hbm [resolvable:$true] %s344
      %347 = dma.vmem_to_hbm [thread:$0]  %s343, 128, %s345, [#allocation4]
    $region33: #{tpu_custom_call.1} parent=1 // pred_fallthru
      _
    // Predicated region
    $region34: #{tpu_custom_call.1} parent=1 // pred_check
      _
    $region35: #{tpu_custom_call.1} parent=1 // pred_check_branch
      %349 = sbr.rel (0) target = $region37
    $region36: #{tpu_custom_call.1} parent=1 // pred_region
      %351 = vsyncadd [#allocation10], 0
      %s353 = sshll.u32 [#allocation9], 4
      %s354 = int_to_ptr.vmem [resolvable:$true] %s353
      %s355 = sshll.u32 %s5, 4
      %s356 = int_to_ptr.hbm [resolvable:$true] %s355
      %358 = dma.vmem_to_hbm [thread:$0]  %s354, 128, %s356, [#allocation10]
    $region37: #{tpu_custom_call.1} parent=1 // pred_fallthru
      _
    // Predicated region
    $region38: #{tpu_custom_call.1} parent=1 // pred_check
      _
    $region39: #{tpu_custom_call.1} parent=1 // pred_check_branch
      %360 = sbr.rel (0) target = $region41
    $region40: #{tpu_custom_call.1} parent=1 // pred_region
      %362 = vsyncadd [#allocation10], 0
      %s364 = sshll.u32 [#allocation11], 4
      %s365 = int_to_ptr.vmem [resolvable:$true] %s364
      %s366 = sshll.u32 %s6, 4
      %s367 = int_to_ptr.hbm [resolvable:$true] %s366
      %369 = dma.vmem_to_hbm [thread:$0]  %s365, 128, %s367, [#allocation10]
    $region41: #{tpu_custom_call.1} parent=1 // pred_fallthru
      _
    // Predicated region
    $region42: #{tpu_custom_call.1} parent=1 // pred_check
      _
    $region43: #{tpu_custom_call.1} parent=1 // pred_check_branch
      %371 = sbr.rel (0) target = $region45
    $region44: #{tpu_custom_call.1} parent=1 // pred_region
      %373 = dma.done [#allocation4], 128
    $region45: #{tpu_custom_call.1} parent=1 // pred_fallthru
      _
    // Predicated region
    $region46: #{tpu_custom_call.1} parent=1 // pred_check
      _
    $region47: #{tpu_custom_call.1} parent=1 // pred_check_branch
      %375 = sbr.rel (0) target = $region49
    $region48: #{tpu_custom_call.1} parent=1 // pred_region
      %377 = dma.done [#allocation10], 128
    $region49: #{tpu_custom_call.1} parent=1 // pred_fallthru
      _
    // Predicated region
    $region50: #{tpu_custom_call.1} parent=1 // pred_check
      _
    $region51: #{tpu_custom_call.1} parent=1 // pred_check_branch
      %379 = sbr.rel (0) target = $region53
    $region52: #{tpu_custom_call.1} parent=1 // pred_region
      %381 = dma.done [#allocation10], 128
    $region53: #{tpu_custom_call.1} parent=1 // pred_fallthru
      _
    %382 = vsyncpa [#allocation3], 1
    %383 = vsyncpa [#allocation6], 1
    %384 = vsyncpa [#allocation4], 1
    %385 = vsyncpa [#allocation10], 1

</llo_original>
